<compile_context>
chip_gen: v7x
topology: tpu7x:2x2x1
jax: 0.10.0
libtpu: 0.0.40
codegen_flags: <defaults>
</compile_context>

<pallas_src>
import jax
import jax.numpy as jnp
from jax import lax
from jax.experimental import pallas as pl
from jax.experimental.pallas import tpu as pltpu


# Behaves exactly like -inf after exp() (underflows to 0 in f32) but avoids
# inf-inf / NaN arithmetic in the online-LSE recurrence.  Safe because
# |sim| <= 1/temperature << 1e30 (the 1/temperature scale rides in the row
# operand, so logits never exceed that bound).
_NEG_LARGE = -1.0e30


def _round_up(a: int, b: int) -> int:
    return (a + b - 1) // b * b


def _make_ntxent_kernel(*, n_valid: int, tile_m: int, tile_k: int,
                        num_col_blocks: int, first_pad_block: int,
                        has_pad: bool):
    # Everything closed over is a Python scalar — the kernel captures no
    # JAX constants.
    ratio = tile_m // tile_k  # tile_m is a multiple of tile_k (asserted).

    def kernel(xr_ref, xc_ref, o_ref, m_sc, l_sc, pos_sc):
        i = pl.program_id(0)   # row-tile index  ("parallel")
        j = pl.program_id(1)   # col-tile index  ("arbitrary" reduction axis)

        # ---- init the online-LSE state at the start of every row sweep ----
        @pl.when(j == 0)
        def _init():
            m_sc[...] = jnp.full_like(m_sc, _NEG_LARGE)
            l_sc[...] = jnp.zeros_like(l_sc)
            pos_sc[...] = jnp.zeros_like(pos_sc)

        # ---- similarity block on the MXU: (TM, D) . (TK, D)^T -> (TM, TK) ----
        # Operands are pre-normalized (row operand already scaled by 1/T); the
        # contraction uses the last dim of BOTH operands so neither tile is
        # transposed.  Accumulation is f32.
        sim = lax.dot_general(
            xr_ref[...], xc_ref[...],
            dimension_numbers=(((1,), (1,)), ((), ())),
            preferred_element_type=jnp.float32,
        )

        def _lse_update(s):
            # Online log-sum-exp update (writes m_sc / l_sc scratch).
            m_prev = m_sc[...]
            m_new = jnp.maximum(m_prev, jnp.max(s, axis=1, keepdims=True))
            l_sc[...] = (l_sc[...] * jnp.exp(m_prev - m_new)
                         + jnp.sum(jnp.exp(s - m_new), axis=1, keepdims=True))
            m_sc[...] = m_new

        # "Band" blocks: column blocks whose global columns overlap this row
        # tile's global rows — the only place the self-diagonal and the
        # positive partner column can appear.
        if ratio == 1:
            on_band = j == i
        else:
            on_band = (j // ratio) == i

        # ---- band blocks: positive logit + self/pad masking + LSE update ----
        @pl.when(on_band)
        def _band():
            rid = i * tile_m + lax.broadcasted_iota(
                jnp.int32, (tile_m, tile_k), 0)
            cid = j * tile_k + lax.broadcasted_iota(
                jnp.int32, (tile_m, tile_k), 1)
            # Partner of row r is r^1 (labels[0::2]+=1, labels[1::2]-=1).  The
            # partner column of every row in this row tile falls in exactly
            # one band block, so accumulating (+=) over band blocks is exact.
            partner = jnp.where((rid % 2) == 0, rid + 1, rid - 1)
            pos_sc[...] += jnp.sum(jnp.where(cid == partner, sim, 0.0),
                                   axis=1, keepdims=True)
            invalid = cid == rid
            if has_pad:
                invalid = invalid | (cid >= n_valid)
            _lse_update(jnp.where(invalid, _NEG_LARGE, sim))

        # ---- off-band blocks: fast path (no iotas / masks / selects) ----
        if has_pad:
            @pl.when(jnp.logical_and(jnp.logical_not(on_band),
                                     j >= first_pad_block))
            def _pad_tail():
                cid = j * tile_k + lax.broadcasted_iota(
                    jnp.int32, (tile_m, tile_k), 1)
                _lse_update(jnp.where(cid >= n_valid, _NEG_LARGE, sim))

            @pl.when(jnp.logical_and(jnp.logical_not(on_band),
                                     j < first_pad_block))
            def _fast():
                _lse_update(sim)
        else:
            @pl.when(jnp.logical_not(on_band))
            def _fast():
                _lse_update(sim)

        # ---- finalize: per-row CE, drop padded rows, reduce to a partial ----
        @pl.when(j == num_col_blocks - 1)
        def _fin():
            lse = m_sc[...] + jnp.log(l_sc[...])          # (TM, 1)
            per_row = lse - pos_sc[...]
            if has_pad:
                row_ok = (i * tile_m + lax.broadcasted_iota(
                    jnp.int32, (tile_m, 1), 0)) < n_valid
                per_row = jnp.where(row_ok, per_row, 0.0)
            partial = jnp.sum(per_row)                    # scalar
            # Broadcast into a full (8,128) slab so the store is unmasked.
            o_ref[...] = jnp.broadcast_to(
                partial, o_ref.shape).astype(jnp.float32)

    return kernel


def _choose_tiles(n: int, d_pad: int, bytes_per_elem: int):
    """Generation-agnostic tile heuristic (see comments)."""
    if n <= 256:
        # Tiny problems: a single tile covering everything (multiple of the
        # 8-sublane granule; n is always even so pairs stay aligned).
        t = max(8, _round_up(n, 8))
        return t, t
    # tile_k = 256 fills the v6e/v7x 256x256 MXU; tile_m grows to cut the
    # column-stream HBM traffic (= (N/TM)*N*Dp bytes) and amortize per-step
    # overhead.  For 256 < n <= 512 keep TM=256 so gr >= 2 (both v7x TCs busy).
    tile_k = 256
    tile_m = 512 if n > 512 else 256

    def est(tm, tk):
        return (2 * (tm + tk) * d_pad * bytes_per_elem   # double-buffered tiles
                + 4 * tm * tk * 4                        # sim + exp temporaries
                + 3 * tm * 128 * 4                       # (TM,1) scratches (lane-padded)
                + 2 * 8 * 128 * 4)                       # output slab

    # Keep the footprint comfortably inside the 32 MiB scoped default
    # (re-derived for v7x's 64 MiB/TC physical VMEM).
    while tile_m > tile_k and est(tile_m, tile_k) > (24 << 20):
        tile_m //= 2
    return tile_m, tile_k


def ntxent_loss(embeddings: jnp.ndarray, temperature: float = 0.5, *,
                block_rows: int | None = None,
                block_cols: int | None = None,
                matmul_dtype=jnp.bfloat16) -> jnp.ndarray:
    """NT-Xent loss. embeddings: (batch, n_pairs, 2, embedding_dim) -> scalar."""
    b, p, two, d = embeddings.shape
    if two != 2:
        raise ValueError(f"Expected 2 views per positive pair, got {two}.")
    n = b * p * two
    inv_temp = float(1.0 / temperature)

    d_pad = _round_up(max(d, 1), 128)           # pad D to the 128-lane width
    bpe = jnp.dtype(matmul_dtype).itemsize
    if block_rows is None and block_cols is None:
        tile_m, tile_k = _choose_tiles(n, d_pad, bpe)
    else:
        tile_m = block_rows if block_rows is not None else block_cols
        tile_k = block_cols if block_cols is not None else block_rows
    if (tile_m % 8) or (tile_k % 8) or (tile_m % tile_k):
        raise ValueError("tile_m must be a multiple of tile_k, both multiples of 8.")

    n_pad = _round_up(n, tile_m)                # pad N to the row-tile size
    gr = n_pad // tile_m
    gc = n_pad // tile_k
    has_pad = n_pad > n

    # ---- pre-normalize ONCE outside the grid (hoisted off the VALU/EUP) ----
    # Matches torch.nn.functional.normalize(x, dim=1, eps=1e-12); 1/temperature
    # is folded into the row operand so the kernel never rescales sim.
    x = embeddings.reshape(n, d).astype(jnp.float32)
    inv_norm = lax.rsqrt(jnp.maximum(jnp.sum(x * x, axis=1, keepdims=True),
                                     1e-24))
    x_col = (x * inv_norm).astype(matmul_dtype)
    x_row = (x * (inv_norm * inv_temp)).astype(matmul_dtype)
    pad = ((0, n_pad - n), (0, d_pad - d))
    x_row = jnp.pad(x_row, pad)
    x_col = jnp.pad(x_col, pad)

    kernel = _make_ntxent_kernel(
        n_valid=n, tile_m=tile_m, tile_k=tile_k, num_col_blocks=gc,
        first_pad_block=n // tile_k, has_pad=has_pad)

    # Explicit VMEM budget (leave headroom; cap below v7x's 64 MiB/TC).
    est_vmem = (2 * (tile_m + tile_k) * d_pad * bpe + 4 * tile_m * tile_k * 4
                + 3 * tile_m * 128 * 4 + 2 * 8 * 128 * 4)
    vmem_limit = int(min(64 << 20, max(32 << 20, 2 * est_vmem)))

    partials = pl.pallas_call(
        kernel,
        out_shape=jax.ShapeDtypeStruct((gr, 8, 128), jnp.float32),
        grid_spec=pltpu.PrefetchScalarGridSpec(
            num_scalar_prefetch=0,
            grid=(gr, gc),
            in_specs=[
                pl.BlockSpec((tile_m, d_pad), lambda i, j: (i, 0)),  # row tile
                pl.BlockSpec((tile_k, d_pad), lambda i, j: (j, 0)),  # col tile
            ],
            out_specs=pl.BlockSpec((1, 8, 128), lambda i, j: (i, 0, 0)),
            scratch_shapes=[
                pltpu.VMEM((tile_m, 1), jnp.float32),  # running max m
                pltpu.VMEM((tile_m, 1), jnp.float32),  # running sum l
                pltpu.VMEM((tile_m, 1), jnp.float32),  # positive logit
            ],
        ),
        compiler_params=pltpu.CompilerParams(
            dimension_semantics=("parallel", "arbitrary"),
            vmem_limit_bytes=vmem_limit),
    )(x_row, x_col)

    # Each row tile wrote its partial sum broadcast over an (8,128) slab;
    # pick one lane per tile and finish the (tiny) mean outside the kernel.
    return partials[:, 0, 0].sum() / n


def _reference_ntxent(embeddings, temperature=0.5):
    """Pure-JAX f32 reference matching the PyTorch module."""
    b, p, two, d = embeddings.shape
    n = b * p * two
    x = embeddings.reshape(n, d).astype(jnp.float32)
    x = x / jnp.maximum(jnp.linalg.norm(x, axis=1, keepdims=True), 1e-12)
    sim = (x @ x.T) / temperature
    sim = jnp.where(jnp.eye(n, dtype=bool), -jnp.inf, sim)
    labels = jnp.arange(n) + jnp.where(jnp.arange(n) % 2 == 0, 1, -1)
    lse = jax.scipy.special.logsumexp(sim, axis=1)
    pos = sim[jnp.arange(n), labels]
    return jnp.mean(lse - pos)


if __name__ == "__main__":
    key = jax.random.PRNGKey(0)
    batch_size, n_pairs, embedding_dim = 2, 4, 32
    embeddings = jax.random.normal(
        key, (batch_size, n_pairs, 2, embedding_dim), dtype=jnp.float32)

    ref = _reference_ntxent(embeddings, temperature=0.5)

    # Default path: pre-normalized bf16 operands on the MXU (f32 softmax).
    loss_bf16 = ntxent_loss(embeddings, temperature=0.5)
    jax.block_until_ready(loss_bf16)
    assert jnp.allclose(loss_bf16, ref, atol=2e-2, rtol=2e-2), (loss_bf16, ref)

    # f32-matmul path for a tight numerical check of the kernel structure.
    loss_f32 = ntxent_loss(embeddings, temperature=0.5,
                           matmul_dtype=jnp.float32)
    jax.block_until_ready(loss_f32)
    assert jnp.allclose(loss_f32, ref, atol=1e-4, rtol=1e-4), (loss_f32, ref)

    # Exercise the asymmetric-tile / padded path (tile_m != tile_k, padding)
    # on the same tiny problem to validate the generalized band/pad gating.
    loss_tiled = ntxent_loss(embeddings, temperature=0.5,
                             block_rows=16, block_cols=8,
                             matmul_dtype=jnp.float32)
    jax.block_until_ready(loss_tiled)
    assert jnp.allclose(loss_tiled, ref, atol=1e-4, rtol=1e-4), (loss_tiled, ref)

    print("KERNEL_OK")
</pallas_src>

<mosaic_0001>
module attributes {stable_mosaic.version = 11 : i64} {
  func.func @kernel(%arg0: i32, %arg1: i32, %arg2: memref<16x128xbf16, #tpu.memory_space<vmem>>, %arg3: memref<16x128xbf16, #tpu.memory_space<vmem>>, %arg4: memref<1x8x128xf32, #tpu.memory_space<vmem>>, %arg5: memref<16x1xf32, #tpu.memory_space<vmem>>, %arg6: memref<16x1xf32, #tpu.memory_space<vmem>>, %arg7: memref<16x1xf32, #tpu.memory_space<vmem>>) attributes {dimension_semantics = [#tpu.dimension_semantics<parallel>, #tpu.dimension_semantics<arbitrary>], iteration_bounds = array<i64: 1, 1>, scalar_prefetch = 0 : i64, scratch_operands = 3 : i64, tpu.core_type = #tpu.core_type<tc>, window_params = [{transform_indices = @transform_0, window_bounds = array<i64: 16, 128>}, {transform_indices = @transform_1, window_bounds = array<i64: 16, 128>}, {transform_indices = @transform_2, window_bounds = array<i64: 1, 8, 128>}]} {
    %c0_i32 = arith.constant 0 : i32
    %0 = arith.cmpi eq, %arg1, %c0_i32 : i32
    %1 = arith.extui %0 : i1 to i32
    %c0_i32_0 = arith.constant 0 : i32
    %2 = arith.cmpi ne, %1, %c0_i32_0 : i32
    scf.if %2 {
      %cst_8 = arith.constant -1.000000e+30 : f32
      %15 = vector.broadcast %cst_8 : f32 to vector<16x1xf32>
      %c0_9 = arith.constant 0 : index
      %c0_10 = arith.constant 0 : index
      %16 = vector.load %arg5[%c0_9, %c0_10] : memref<16x1xf32, #tpu.memory_space<vmem>>, vector<16x1xf32>
      tpu.vector_store %arg5[%c0_9, %c0_10], %15 {strides = array<i32>} : memref<16x1xf32, #tpu.memory_space<vmem>>, vector<16x1xf32>,
      %cst_11 = arith.constant 0.000000e+00 : f32
      %17 = vector.broadcast %cst_11 : f32 to vector<16x1xf32>
      %c0_12 = arith.constant 0 : index
      %c0_13 = arith.constant 0 : index
      %18 = vector.load %arg6[%c0_12, %c0_13] : memref<16x1xf32, #tpu.memory_space<vmem>>, vector<16x1xf32>
      tpu.vector_store %arg6[%c0_12, %c0_13], %17 {strides = array<i32>} : memref<16x1xf32, #tpu.memory_space<vmem>>, vector<16x1xf32>,
      %cst_14 = arith.constant 0.000000e+00 : f32
      %19 = vector.broadcast %cst_14 : f32 to vector<16x1xf32>
      %c0_15 = arith.constant 0 : index
      %c0_16 = arith.constant 0 : index
      %20 = vector.load %arg7[%c0_15, %c0_16] : memref<16x1xf32, #tpu.memory_space<vmem>>, vector<16x1xf32>
      tpu.vector_store %arg7[%c0_15, %c0_16], %19 {strides = array<i32>} : memref<16x1xf32, #tpu.memory_space<vmem>>, vector<16x1xf32>,
    } else {
    }
    %c0 = arith.constant 0 : index
    %c0_1 = arith.constant 0 : index
    %3 = vector.load %arg2[%c0, %c0_1] : memref<16x128xbf16, #tpu.memory_space<vmem>>, vector<16x128xbf16>
    %c0_2 = arith.constant 0 : index
    %c0_3 = arith.constant 0 : index
    %4 = vector.load %arg3[%c0_2, %c0_3] : memref<16x128xbf16, #tpu.memory_space<vmem>>, vector<16x128xbf16>
    %cst = arith.constant dense<0.000000e+00> : vector<16x16xf32>
    %5 = tpu.matmul %3, %4, %cst {dimension_numbers = #tpu.dot_dimension_numbers<[1], [1], [0], [0], [0, 0, 1, 0], [], []>} : vector<16x128xbf16>, vector<16x128xbf16>, vector<16x16xf32> -> vector<16x16xf32>
    %6 = arith.cmpi eq, %arg1, %arg0 : i32
    %7 = arith.extui %6 : i1 to i32
    %c0_i32_4 = arith.constant 0 : i32
    %8 = arith.cmpi ne, %7, %c0_i32_4 : i32
    scf.if %8 {
      %c16_i32 = arith.constant 16 : i32
      %15 = arith.muli %arg0, %c16_i32 : i32
      %16 = tpu.iota {dimensions = array<i32: 0>} : vector<16x16xi32>
      %17 = vector.broadcast %15 : i32 to vector<16x16xi32>
      %18 = arith.addi %17, %16 : vector<16x16xi32>
      %c16_i32_8 = arith.constant 16 : i32
      %19 = arith.muli %arg1, %c16_i32_8 : i32
      %20 = tpu.iota {dimensions = array<i32: 1>} : vector<16x16xi32>
      %21 = vector.broadcast %19 : i32 to vector<16x16xi32>
      %22 = arith.addi %21, %20 : vector<16x16xi32>
      %c2_i32 = arith.constant 2 : i32
      %c0_i32_9 = arith.constant 0 : i32
      %23 = arith.cmpi eq, %c2_i32, %c0_i32_9 : i32
      %c1_i32 = arith.constant 1 : i32
      %24 = arith.select %23, %c1_i32, %c2_i32 : i32
      %25 = vector.broadcast %24 : i32 to vector<16x16xi32>
      %26 = arith.remsi %18, %25 : vector<16x16xi32>
      %c0_i32_10 = arith.constant 0 : i32
      %27 = vector.broadcast %c0_i32_10 : i32 to vector<16x16xi32>
      %28 = arith.cmpi ne, %26, %27 : vector<16x16xi32>
      %c0_i32_11 = arith.constant 0 : i32
      %29 = vector.broadcast %c0_i32_11 : i32 to vector<16x16xi32>
      %30 = arith.cmpi slt, %26, %29 : vector<16x16xi32>
      %c0_i32_12 = arith.constant 0 : i32
      %31 = arith.cmpi slt, %24, %c0_i32_12 : i32
      %32 = vector.broadcast %31 : i1 to vector<16x16xi1>
      %33 = vector.broadcast %32 : vector<16x16xi1> to vector<16x16xi1>
      %34 = arith.xori %30, %33 : vector<16x16xi1>
      %35 = arith.andi %34, %28 : vector<16x16xi1>
      %36 = vector.broadcast %24 : i32 to vector<16x16xi32>
      %37 = arith.addi %26, %36 : vector<16x16xi32>
      %38 = arith.select %35, %37, %26 : vector<16x16xi1>, vector<16x16xi32>
      %c0_i32_13 = arith.constant 0 : i32
      %39 = vector.broadcast %c0_i32_13 : i32 to vector<16x16xi32>
      %40 = arith.cmpi eq, %38, %39 : vector<16x16xi32>
      %c1_i32_14 = arith.constant 1 : i32
      %41 = vector.broadcast %c1_i32_14 : i32 to vector<16x16xi32>
      %42 = arith.addi %18, %41 : vector<16x16xi32>
      %c1_i32_15 = arith.constant 1 : i32
      %43 = vector.broadcast %c1_i32_15 : i32 to vector<16x16xi32>
      %44 = arith.subi %18, %43 : vector<16x16xi32>
      %45 = arith.select %40, %42, %44 : vector<16x16xi1>, vector<16x16xi32>
      %c0_16 = arith.constant 0 : index
      %c0_17 = arith.constant 0 : index
      %46 = vector.load %arg7[%c0_16, %c0_17] : memref<16x1xf32, #tpu.memory_space<vmem>>, vector<16x1xf32>
      %47 = arith.cmpi eq, %22, %45 : vector<16x16xi32>
      %cst_18 = arith.constant 0.000000e+00 : f32
      %48 = vector.broadcast %cst_18 : f32 to vector<16x16xf32>
      %49 = arith.select %47, %5, %48 : vector<16x16xi1>, vector<16x16xf32>
      %cst_19 = arith.constant dense<0.000000e+00> : vector<16xf32>
      %50 = vector.multi_reduction <add>, %49, %cst_19 [1] : vector<16x16xf32> to vector<16xf32>
      %51 = vector.shape_cast %50 : vector<16xf32> to vector<16x1xf32>
      %52 = arith.addf %46, %51 : vector<16x1xf32>
      %c0_20 = arith.constant 0 : index
      %c0_21 = arith.constant 0 : index
      %53 = vector.load %arg7[%c0_20, %c0_21] : memref<16x1xf32, #tpu.memory_space<vmem>>, vector<16x1xf32>
      tpu.vector_store %arg7[%c0_20, %c0_21], %52 {strides = array<i32>} : memref<16x1xf32, #tpu.memory_space<vmem>>, vector<16x1xf32>,
      %54 = arith.cmpi eq, %22, %18 : vector<16x16xi32>
      %cst_22 = arith.constant -1.000000e+30 : f32
      %55 = vector.broadcast %cst_22 : f32 to vector<16x16xf32>
      %56 = arith.select %54, %55, %5 : vector<16x16xi1>, vector<16x16xf32>
      %c0_23 = arith.constant 0 : index
      %c0_24 = arith.constant 0 : index
      %57 = vector.load %arg5[%c0_23, %c0_24] : memref<16x1xf32, #tpu.memory_space<vmem>>, vector<16x1xf32>
      %cst_25 = arith.constant dense<0xFF800000> : vector<16xf32>
      %58 = vector.multi_reduction <maximumf>, %56, %cst_25 [1] : vector<16x16xf32> to vector<16xf32>
      %59 = vector.shape_cast %58 : vector<16xf32> to vector<16x1xf32>
      %60 = arith.maximumf %57, %59 : vector<16x1xf32>
      %c0_26 = arith.constant 0 : index
      %c0_27 = arith.constant 0 : index
      %61 = vector.load %arg6[%c0_26, %c0_27] : memref<16x1xf32, #tpu.memory_space<vmem>>, vector<16x1xf32>
      %62 = arith.subf %57, %60 : vector<16x1xf32>
      %63 = math.exp %62 : vector<16x1xf32>
      %64 = arith.mulf %61, %63 : vector<16x1xf32>
      %65 = vector.broadcast %60 : vector<16x1xf32> to vector<16x16xf32>
      %66 = arith.subf %56, %65 : vector<16x16xf32>
      %67 = math.exp %66 : vector<16x16xf32>
      %cst_28 = arith.constant dense<0.000000e+00> : vector<16xf32>
      %68 = vector.multi_reduction <add>, %67, %cst_28 [1] : vector<16x16xf32> to vector<16xf32>
      %69 = vector.shape_cast %68 : vector<16xf32> to vector<16x1xf32>
      %70 = arith.addf %64, %69 : vector<16x1xf32>
      %c0_29 = arith.constant 0 : index
      %c0_30 = arith.constant 0 : index
      %71 = vector.load %arg6[%c0_29, %c0_30] : memref<16x1xf32, #tpu.memory_space<vmem>>, vector<16x1xf32>
      tpu.vector_store %arg6[%c0_29, %c0_30], %70 {strides = array<i32>} : memref<16x1xf32, #tpu.memory_space<vmem>>, vector<16x1xf32>,
      %c0_31 = arith.constant 0 : index
      %c0_32 = arith.constant 0 : index
      %72 = vector.load %arg5[%c0_31, %c0_32] : memref<16x1xf32, #tpu.memory_space<vmem>>, vector<16x1xf32>
      tpu.vector_store %arg5[%c0_31, %c0_32], %60 {strides = array<i32>} : memref<16x1xf32, #tpu.memory_space<vmem>>, vector<16x1xf32>,
    } else {
    }
    %true = arith.constant true
    %9 = arith.xori %6, %true : i1
    %10 = arith.extui %9 : i1 to i32
    %c0_i32_5 = arith.constant 0 : i32
    %11 = arith.cmpi ne, %10, %c0_i32_5 : i32
    scf.if %11 {
      %c0_8 = arith.constant 0 : index
      %c0_9 = arith.constant 0 : index
      %15 = vector.load %arg5[%c0_8, %c0_9] : memref<16x1xf32, #tpu.memory_space<vmem>>, vector<16x1xf32>
      %cst_10 = arith.constant dense<0xFF800000> : vector<16xf32>
      %16 = vector.multi_reduction <maximumf>, %5, %cst_10 [1] : vector<16x16xf32> to vector<16xf32>
      %17 = vector.shape_cast %16 : vector<16xf32> to vector<16x1xf32>
      %18 = arith.maximumf %15, %17 : vector<16x1xf32>
      %c0_11 = arith.constant 0 : index
      %c0_12 = arith.constant 0 : index
      %19 = vector.load %arg6[%c0_11, %c0_12] : memref<16x1xf32, #tpu.memory_space<vmem>>, vector<16x1xf32>
      %20 = arith.subf %15, %18 : vector<16x1xf32>
      %21 = math.exp %20 : vector<16x1xf32>
      %22 = arith.mulf %19, %21 : vector<16x1xf32>
      %23 = vector.broadcast %18 : vector<16x1xf32> to vector<16x16xf32>
      %24 = arith.subf %5, %23 : vector<16x16xf32>
      %25 = math.exp %24 : vector<16x16xf32>
      %cst_13 = arith.constant dense<0.000000e+00> : vector<16xf32>
      %26 = vector.multi_reduction <add>, %25, %cst_13 [1] : vector<16x16xf32> to vector<16xf32>
      %27 = vector.shape_cast %26 : vector<16xf32> to vector<16x1xf32>
      %28 = arith.addf %22, %27 : vector<16x1xf32>
      %c0_14 = arith.constant 0 : index
      %c0_15 = arith.constant 0 : index
      %29 = vector.load %arg6[%c0_14, %c0_15] : memref<16x1xf32, #tpu.memory_space<vmem>>, vector<16x1xf32>
      tpu.vector_store %arg6[%c0_14, %c0_15], %28 {strides = array<i32>} : memref<16x1xf32, #tpu.memory_space<vmem>>, vector<16x1xf32>,
      %c0_16 = arith.constant 0 : index
      %c0_17 = arith.constant 0 : index
      %30 = vector.load %arg5[%c0_16, %c0_17] : memref<16x1xf32, #tpu.memory_space<vmem>>, vector<16x1xf32>
      tpu.vector_store %arg5[%c0_16, %c0_17], %18 {strides = array<i32>} : memref<16x1xf32, #tpu.memory_space<vmem>>, vector<16x1xf32>,
    } else {
    }
    %c0_i32_6 = arith.constant 0 : i32
    %12 = arith.cmpi eq, %arg1, %c0_i32_6 : i32
    %13 = arith.extui %12 : i1 to i32
    %c0_i32_7 = arith.constant 0 : i32
    %14 = arith.cmpi ne, %13, %c0_i32_7 : i32
    scf.if %14 {
      %c0_8 = arith.constant 0 : index
      %c0_9 = arith.constant 0 : index
      %15 = vector.load %arg5[%c0_8, %c0_9] : memref<16x1xf32, #tpu.memory_space<vmem>>, vector<16x1xf32>
      %c0_10 = arith.constant 0 : index
      %c0_11 = arith.constant 0 : index
      %16 = vector.load %arg6[%c0_10, %c0_11] : memref<16x1xf32, #tpu.memory_space<vmem>>, vector<16x1xf32>
      %17 = math.log %16 : vector<16x1xf32>
      %18 = arith.addf %15, %17 : vector<16x1xf32>
      %c0_12 = arith.constant 0 : index
      %c0_13 = arith.constant 0 : index
      %19 = vector.load %arg7[%c0_12, %c0_13] : memref<16x1xf32, #tpu.memory_space<vmem>>, vector<16x1xf32>
      %20 = arith.subf %18, %19 : vector<16x1xf32>
      %21 = vector.shape_cast %20 : vector<16x1xf32> to vector<1x16x1xf32>
      %cst_14 = arith.constant dense<0.000000e+00> : vector<1xf32>
      %22 = vector.multi_reduction <add>, %21, %cst_14 [1, 2] : vector<1x16x1xf32> to vector<1xf32>
      %23 = vector.shape_cast %22 : vector<1xf32> to vector<1x1x1xf32>
      %24 = vector.extract %23[0, 0, 0] : f32 from vector<1x1x1xf32>
      %25 = vector.broadcast %24 : f32 to vector<1x8x128xf32>
      %c0_15 = arith.constant 0 : index
      %c0_16 = arith.constant 0 : index
      %c0_17 = arith.constant 0 : index
      %26 = vector.load %arg4[%c0_15, %c0_16, %c0_17] : memref<1x8x128xf32, #tpu.memory_space<vmem>>, vector<1x8x128xf32>
      tpu.vector_store %arg4[%c0_15, %c0_16, %c0_17], %25 {strides = array<i32>} : memref<1x8x128xf32, #tpu.memory_space<vmem>>, vector<1x8x128xf32>,
    } else {
    }
    return
  }
  func.func @transform_0(%arg0: i32, %arg1: i32) -> (i32, i32) {
    %c0_i32 = arith.constant 0 : i32
    %c0_i32_0 = arith.constant 0 : i32
    return %arg0, %c0_i32 : i32, i32
  }
  func.func @transform_1(%arg0: i32, %arg1: i32) -> (i32, i32) {
    %c0_i32 = arith.constant 0 : i32
    %c0_i32_0 = arith.constant 0 : i32
    return %arg1, %c0_i32 : i32, i32
  }
  func.func @transform_2(%arg0: i32, %arg1: i32) -> (i32, i32, i32) {
    %c0_i32 = arith.constant 0 : i32
    %c0_i32_0 = arith.constant 0 : i32
    %c0_i32_1 = arith.constant 0 : i32
    return %arg0, %c0_i32, %c0_i32_0 : i32, i32, i32
  }
}

</mosaic_0001>

<llo_original>
// kernel: tpu_custom_call.1
$region0: #{tpu_custom_call.1}
  #allocation0 [shape = 'u32[]', space=smem, size = 0x4, offset = 0x4, fixed_abs, tag = 'smem constant byte address 0x4 - core index']
  #allocation1 [shape = 'u32[144,128]{1,0:T(1,128)}', space=vmem, size = 0x12000, scoped, tag = 'internal scratch']
  #allocation2 [shape = 'f32[16,1]{1,0:T(8,128)}', space=vmem, size = 0x2000, scoped, tag = 'scratch operand']
  #allocation3 [shape = 'f32[16,1]{1,0:T(8,128)}', space=vmem, size = 0x2000, scoped, tag = 'scratch operand']
  #allocation4 [shape = 'f32[16,1]{1,0:T(8,128)}', space=vmem, size = 0x2000, scoped, tag = 'scratch operand']
  %s0 = inlined_call_operand.hbm [shape: bf16[16,128], index: 0, kind: input, shape index: {}]
  %s1 = inlined_call_operand.hbm [shape: bf16[16,128], index: 1, kind: input, shape index: {}]
  %s2 = inlined_call_operand.hbm [shape: f32[1,8,128], index: 2, kind: output, shape index: {}]
  %s3 = sld [smem:[#allocation0]]
  $region42: #{tpu_custom_call.1} parent=0
    _
  %s5 = ssub.s32 1, %s3
  %s6 = scalar_select 0, %s5, %s3
  $region1: #{tpu_custom_call.1} parent=0
    #allocation5 [shape = 'u8[4096]{0}', space=vmem, size = 0x1000, scoped, tag = 'input window, operand 0, single buffered']
    #allocation6 [shape = 's32[1]{0}', space=sflag, size = 0x4, scoped, tag = 'scoped memory for tpu_custom_call.1']
    #allocation7 [shape = 's32[1]{0}', space=sflag, size = 0x4, scoped, tag = 'scoped memory for tpu_custom_call.1']
    #allocation8 [shape = 'u8[4096]{0}', space=vmem, size = 0x1000, scoped, tag = 'input window, operand 1, single buffered']
    #allocation9 [shape = 's32[1]{0}', space=sflag, size = 0x4, scoped, tag = 'scoped memory for tpu_custom_call.1']
    #allocation10 [shape = 'u8[4096]{0}', space=vmem, size = 0x1000, scoped, tag = 'output window, operand 0, single buffered']
    %7 = vsyncpa [#allocation6], 0
    %8 = vsyncpa [#allocation9], 0
    %9 = vsyncpa [#allocation7], 0
    // Predicated region
    $region2: #{tpu_custom_call.1} parent=1 // pred_check
      _
    $region3: #{tpu_custom_call.1} parent=1 // pred_check_branch
      %11 = sbr.rel (0) target = $region5
    $region4: #{tpu_custom_call.1} parent=1 // pred_region
      %s13 = ssub.s32 128, 128
      %14 = vsyncadd [#allocation6], %s13
      %s15 = sshll.u32 [#allocation5], 4
      %s16 = int_to_ptr.vmem [resolvable:$true] %s15
      %21 = dma.hbm_to_vmem [thread:$0]  %s0, 128, %s16, [#allocation6], 64, 64, 4
    $region5: #{tpu_custom_call.1} parent=1 // pred_fallthru
      _
    // Predicated region
    $region6: #{tpu_custom_call.1} parent=1 // pred_check
      _
    $region7: #{tpu_custom_call.1} parent=1 // pred_check_branch
      %23 = sbr.rel (0) target = $region9
    $region8: #{tpu_custom_call.1} parent=1 // pred_region
      %s25 = ssub.s32 128, 128
      %26 = vsyncadd [#allocation9], %s25
      %s27 = sshll.u32 [#allocation8], 4
      %s28 = int_to_ptr.vmem [resolvable:$true] %s27
      %33 = dma.hbm_to_vmem [thread:$0]  %s1, 128, %s28, [#allocation9], 64, 64, 4
    $region9: #{tpu_custom_call.1} parent=1 // pred_fallthru
      _
    // Predicated region
    $region10: #{tpu_custom_call.1} parent=1 // pred_check
      _
    $region11: #{tpu_custom_call.1} parent=1 // pred_check_branch
      %35 = sbr.rel (0) target = $region13
    $region12: #{tpu_custom_call.1} parent=1 // pred_region
      %36 = dma.done [#allocation6], 128
    $region13: #{tpu_custom_call.1} parent=1 // pred_fallthru
      _
    // Predicated region
    $region14: #{tpu_custom_call.1} parent=1 // pred_check
      _
    $region15: #{tpu_custom_call.1} parent=1 // pred_check_branch
      %38 = sbr.rel (0) target = $region17
    $region16: #{tpu_custom_call.1} parent=1 // pred_region
      %39 = dma.done [#allocation9], 128
    $region17: #{tpu_custom_call.1} parent=1 // pred_fallthru
      _
    %p41 = scmp.eq.s32.totalorder 0, 0
    // Predicated region
    $region18: #{tpu_custom_call.1} parent=1 // pred_check
      %p42 = pneg %p41
    $region19: #{tpu_custom_call.1} parent=1 // pred_check_branch
      %44 = sbr.rel (%p42) target = $region21
    $region20: #{tpu_custom_call.1} parent=1 // pred_region
      %vm45 = vcmask 7168
      %46 = vst.msk [vmem:[#allocation2] sm:$0xff] %vm45, -1e+30
      %47 = vst.msk [vmem:[#allocation2 + $0x8] sm:$0xff] %vm45, -1e+30
      %48 = vst.msk [vmem:[#allocation3] sm:$0xff] %vm45, 0.0
      %49 = vst.msk [vmem:[#allocation3 + $0x8] sm:$0xff] %vm45, 0.0
      %50 = vst.msk [vmem:[#allocation4] sm:$0xff] %vm45, 0.0
      %51 = vst.msk [vmem:[#allocation4 + $0x8] sm:$0xff] %vm45, 0.0
    $region21: #{tpu_custom_call.1} parent=1 // pred_fallthru
      _
    %v52 = vld [vmem:[#allocation5] sm:$0xf]
    %v53 = vld [vmem:[#allocation5 + $0x4] sm:$0xf]
    %v54 = vld [vmem:[#allocation8] sm:$0xf]
    %v55 = vld [vmem:[#allocation8 + $0x4] sm:$0xf]
    %v58 = vunpack.c.l.b16 %v52
    %v59 = vunpack.c.l.b16 %v53
    %v60 = vpack.c.b16 %v59, %v58
    %v64 = vunpack.c.l.b16 %v54
    %v65 = vunpack.c.l.b16 %v55
    %v66 = vpack.c.b16 %v65, %v64
    %68 = vmatprep.subr.bf16.mxu0 0
    %69 = vmatpush1.bf16.xpose.msra.mxu0 %v66
    %70 = vmatprep.subr.bf16.mxu0 0
    %71 = vmatpush1.bf16.xpose.msra.mxu0 0
    %72 = vmatprep.subr.bf16.mxu0 0
    %73 = vmatpush1.bf16.xpose.msra.mxu0 0
    %74 = vmatprep.subr.bf16.mxu0 0
    %75 = vmatpush1.bf16.xpose.msra.mxu0 0
    %76 = vmatprep.subr.bf16.mxu0 0
    %77 = vmatpush1.bf16.xpose.msra.mxu0 0
    %78 = vmatprep.subr.bf16.mxu0 0
    %79 = vmatpush1.bf16.xpose.msra.mxu0 0
    %80 = vmatprep.subr.bf16.mxu0 0
    %81 = vmatpush1.bf16.xpose.msra.mxu0 0
    %82 = vmatprep.subr.bf16.mxu0 0
    %83 = vmatpush1.bf16.xpose.msra.mxu0 0
    %84 = vmatprep.subr.bf16.mxu0 0
    %85 = vmatpush1.bf16.xpose.msra.mxu0 0
    %86 = vmatprep.subr.bf16.mxu0 0
    %87 = vmatpush1.bf16.xpose.msra.mxu0 0
    %88 = vmatprep.subr.bf16.mxu0 0
    %89 = vmatpush1.bf16.xpose.msra.mxu0 0
    %90 = vmatprep.subr.bf16.mxu0 0
    %91 = vmatpush1.bf16.xpose.msra.mxu0 0
    %92 = vmatprep.subr.bf16.mxu0 0
    %93 = vmatpush1.bf16.xpose.msra.mxu0 0
    %94 = vmatprep.subr.bf16.mxu0 0
    %95 = vmatpush1.bf16.xpose.msra.mxu0 0
    %96 = vmatprep.subr.bf16.mxu0 0
    %97 = vmatpush1.bf16.xpose.msra.mxu0 0
    %98 = vmatprep.subr.bf16.mxu0 0
    %99 = vmatpush1.bf16.xpose.msra.mxu0 0
    %100 = vmatprep.mubr.bf16.mxu0 0
    %101 = vmatmul.mubr.bf16.gmra.mrb[0].mxu0 %v60
    %v102 = vpop.f32.mrb[0].mxu0
    %v103 = vadd.f32 0.0, %v102
    %v104 = vpop.f32.mrb[0].mxu0
    %v105 = vpop.f32.mrb[0].mxu0
    %v106 = vadd.f32 0.0, %v105
    %v107 = vpop.f32.mrb[0].mxu0
    %108 = vdwg.mxu0
    %p109 = scmp.eq.s32.totalorder 0, 0
    // Predicated region
    $region22: #{tpu_custom_call.1} parent=1 // pred_check
      %p110 = pneg %p109
    $region23: #{tpu_custom_call.1} parent=1 // pred_check_branch
      %112 = sbr.rel (%p110) target = $region25
    $region24: #{tpu_custom_call.1} parent=1 // pred_region
      %s113 = smul.u32 0, 16
      %v114 = vlaneseq
      %v115 = vshrl.u32 %v114, 7
      %v116 = vadd.s32 %v115, 8
      %v117 = vstv %s113
      %v118 = vadd.s32 %v117, %v115
      %v119 = vadd.s32 %v117, %v116
      %s120 = smul.u32 0, 16
      %v121 = vlaneseq
      %v122 = vand.u32 %v121, 127
      %v123 = vstv %s120
      %v124 = vadd.s32 %v123, %v122
      %vm125 = vcmp.lt.s32.totalorder %v118, 0
      %v126 = vsub.s32 0, %v118
      %v127 = vsel %vm125, %v126, %v118
      %v128 = vshrl.u32 %v127, 1
      %v129 = vand.u32 %v127, 1
      %v130 = vsub.s32 0, %v129
      %v131 = vsel %vm125, %v130, %v129
      %vm132 = vcmp.lt.s32.totalorder %v119, 0
      %v133 = vsub.s32 0, %v119
      %v134 = vsel %vm132, %v133, %v119
      %v135 = vshrl.u32 %v134, 1
      %v136 = vand.u32 %v134, 1
      %v137 = vsub.s32 0, %v136
      %v138 = vsel %vm132, %v137, %v136
      %vm139 = vcmp.ne.s32.totalorder %v131, 0
      %vm140 = vcmp.ne.s32.totalorder %v138, 0
      %vm141 = vcmp.lt.s32.totalorder %v131, 0
      %vm142 = vcmp.lt.s32.totalorder %v138, 0
      %vm143 = vmand %vm141, %vm139
      %vm144 = vmand %vm142, %vm140
      %v145 = vadd.s32 %v131, 2
      %v146 = vadd.s32 %v138, 2
      %v147 = vsel %vm143, %v145, %v131
      %v148 = vsel %vm144, %v146, %v138
      %vm149 = vcmp.eq.s32.totalorder %v147, 0
      %vm150 = vcmp.eq.s32.totalorder %v148, 0
      %v151 = vadd.s32 %v118, 1
      %v152 = vadd.s32 %v119, 1
      %v153 = vsub.s32 %v118, 1
      %v154 = vsub.s32 %v119, 1
      %v155 = vsel %vm149, %v151, %v153
      %v156 = vsel %vm150, %v152, %v154
      %v157 = vld [vmem:[#allocation4] sm:$0xff]
      %v158 = vld [vmem:[#allocation4 + $0x8] sm:$0xff]
      %vm159 = vcmp.eq.s32.totalorder %v124, %v155
      %vm160 = vcmp.eq.s32.totalorder %v124, %v156
      %v161 = vsel %vm159, %v103, 0.0
      %v162 = vsel %vm160, %v106, 0.0
      %vm163 = vcmask 130048
      %v164 = vsel %vm163, %v161, 0.0
      %165 = vadd.xlane.f32.xlu0 %v164
      %v166 = vpop.xlane.xlu0 %165
      %v167 = vsel %vm163, %v162, 0.0
      %168 = vadd.xlane.f32.xlu0 %v167
      %v169 = vpop.xlane.xlu0 %168
      %v170 = vadd.f32 %v157, %v166
      %v171 = vadd.f32 %v158, %v169
      %vm172 = vcmask 7168
      %173 = vst.msk [vmem:[#allocation4] sm:$0xff] %vm172, %v170
      %174 = vst.msk [vmem:[#allocation4 + $0x8] sm:$0xff] %vm172, %v171
      %vm175 = vcmp.eq.s32.totalorder %v124, %v118
      %vm176 = vcmp.eq.s32.totalorder %v124, %v119
      %v177 = vsel %vm175, -1e+30, %v103
      %v178 = vsel %vm176, -1e+30, %v106
      %v179 = vld [vmem:[#allocation2] sm:$0xff]
      %v180 = vld [vmem:[#allocation2 + $0x8] sm:$0xff]
      %v181 = vsel %vm163, %v177, -inf
      %182 = vmax.xlane.f32.xlu0 %v181
      %v183 = vpop.xlane.xlu0 %182
      %v184 = vsel %vm163, %v178, -inf
      %185 = vmax.xlane.f32.xlu0 %v184
      %v186 = vpop.xlane.xlu0 %185
      %v187 = vmax.f32 %v179, %v183
      %v188 = vmax.f32 %v180, %v186
      %v189 = vld [vmem:[#allocation3] sm:$0xff]
      %v190 = vld [vmem:[#allocation3 + $0x8] sm:$0xff]
      %v191 = vsub.f32 %v179, %v187
      %v192 = vsub.f32 %v180, %v188
      %v193 = vmul.f32 %v191, 1.442695
      %v194 = vpow.pop %v193
      %v195 = vmul.f32 %v192, 1.442695
      %v196 = vpow.pop %v195
      %v197 = vmul.f32 %v189, %v194
      %v198 = vmul.f32 %v190, %v196
      %200 = vset.pattern.permute.xlu0 0
      %201 = vperm.xlu0 %200, %v187
      %v202 = vpop.permute.xlu0 %201
      %205 = vset.pattern.permute.xlu0 0
      %206 = vperm.xlu0 %205, %v188
      %v207 = vpop.permute.xlu0 %206
      %v209 = vsub.f32 %v177, %v202
      %v210 = vsub.f32 %v178, %v207
      %v211 = vmul.f32 %v209, 1.442695
      %v212 = vpow.pop %v211
      %v213 = vmul.f32 %v210, 1.442695
      %v214 = vpow.pop %v213
      %v215 = vsel %vm163, %v212, 0.0
      %216 = vadd.xlane.f32.xlu0 %v215
      %v217 = vpop.xlane.xlu0 %216
      %v218 = vsel %vm163, %v214, 0.0
      %219 = vadd.xlane.f32.xlu0 %v218
      %v220 = vpop.xlane.xlu0 %219
      %v221 = vadd.f32 %v197, %v217
      %v222 = vadd.f32 %v198, %v220
      %223 = vst.msk [vmem:[#allocation3] sm:$0xff] %vm172, %v221
      %224 = vst.msk [vmem:[#allocation3 + $0x8] sm:$0xff] %vm172, %v222
      %225 = vst.msk [vmem:[#allocation2] sm:$0xff] %vm172, %v187
      %226 = vst.msk [vmem:[#allocation2 + $0x8] sm:$0xff] %vm172, %v188
    $region25: #{tpu_custom_call.1} parent=1 // pred_fallthru
      _
    %p227 = scmp.ne.s32.totalorder 0, 0
    // Predicated region
    $region26: #{tpu_custom_call.1} parent=1 // pred_check
      %p228 = pneg %p227
    $region27: #{tpu_custom_call.1} parent=1 // pred_check_branch
      %230 = sbr.rel (%p228) target = $region29
    $region28: #{tpu_custom_call.1} parent=1 // pred_region
      %v231 = vld [vmem:[#allocation2] sm:$0xff]
      %v232 = vld [vmem:[#allocation2 + $0x8] sm:$0xff]
      %vm233 = vcmask 130048
      %v234 = vsel %vm233, %v103, -inf
      %235 = vmax.xlane.f32.xlu0 %v234
      %v236 = vpop.xlane.xlu0 %235
      %v237 = vsel %vm233, %v106, -inf
      %238 = vmax.xlane.f32.xlu0 %v237
      %v239 = vpop.xlane.xlu0 %238
      %v240 = vmax.f32 %v231, %v236
      %v241 = vmax.f32 %v232, %v239
      %v242 = vld [vmem:[#allocation3] sm:$0xff]
      %v243 = vld [vmem:[#allocation3 + $0x8] sm:$0xff]
      %v244 = vsub.f32 %v231, %v240
      %v245 = vsub.f32 %v232, %v241
      %v246 = vmul.f32 %v244, 1.442695
      %v247 = vpow.pop %v246
      %v248 = vmul.f32 %v245, 1.442695
      %v249 = vpow.pop %v248
      %v250 = vmul.f32 %v242, %v247
      %v251 = vmul.f32 %v243, %v249
      %253 = vset.pattern.permute.xlu0 0
      %254 = vperm.xlu0 %253, %v240
      %v255 = vpop.permute.xlu0 %254
      %258 = vset.pattern.permute.xlu0 0
      %259 = vperm.xlu0 %258, %v241
      %v260 = vpop.permute.xlu0 %259
      %v262 = vsub.f32 %v103, %v255
      %v263 = vsub.f32 %v106, %v260
      %v264 = vmul.f32 %v262, 1.442695
      %v265 = vpow.pop %v264
      %v266 = vmul.f32 %v263, 1.442695
      %v267 = vpow.pop %v266
      %v268 = vsel %vm233, %v265, 0.0
      %269 = vadd.xlane.f32.xlu0 %v268
      %v270 = vpop.xlane.xlu0 %269
      %v271 = vsel %vm233, %v267, 0.0
      %272 = vadd.xlane.f32.xlu0 %v271
      %v273 = vpop.xlane.xlu0 %272
      %v274 = vadd.f32 %v250, %v270
      %v275 = vadd.f32 %v251, %v273
      %vm276 = vcmask 7168
      %277 = vst.msk [vmem:[#allocation3] sm:$0xff] %vm276, %v274
      %278 = vst.msk [vmem:[#allocation3 + $0x8] sm:$0xff] %vm276, %v275
      %279 = vst.msk [vmem:[#allocation2] sm:$0xff] %vm276, %v240
      %280 = vst.msk [vmem:[#allocation2 + $0x8] sm:$0xff] %vm276, %v241
    $region29: #{tpu_custom_call.1} parent=1 // pred_fallthru
      _
    // Predicated region
    $region30: #{tpu_custom_call.1} parent=1 // pred_check
      %p281 = pneg %p41
    $region31: #{tpu_custom_call.1} parent=1 // pred_check_branch
      %283 = sbr.rel (%p281) target = $region33
    $region32: #{tpu_custom_call.1} parent=1 // pred_region
      %v284 = vld [vmem:[#allocation2] sm:$0xff]
      %v285 = vld [vmem:[#allocation2 + $0x8] sm:$0xff]
      %v286 = vld [vmem:[#allocation3] sm:$0xff]
      %v287 = vld [vmem:[#allocation3 + $0x8] sm:$0xff]
      %v288 = vlog2.pop %v286
      %v289 = vmul.f32 %v288, 0.6931472
      %v290 = vlog2.pop %v287
      %v291 = vmul.f32 %v290, 0.6931472
      %v292 = vadd.f32 %v284, %v289
      %v293 = vadd.f32 %v285, %v291
      %v294 = vld [vmem:[#allocation4] sm:$0xff]
      %v295 = vld [vmem:[#allocation4 + $0x8] sm:$0xff]
      %v296 = vsub.f32 %v292, %v294
      %v297 = vsub.f32 %v293, %v295
      %vm298 = vcmask 7168
      %v299 = vsel %vm298, %v296, 0.0
      %v300 = vsel %vm298, %v297, 0.0
      %v301 = vadd.f32 %v299, %v300
      %302 = vadd.xlane.f32.xlu0 %v301
      %v303 = vpop.xlane.xlu0 %302
      %v304 = vrot.slane %v303, 4
      %v305 = vadd.f32 %v303, %v304
      %v306 = vrot.slane %v305, 2
      %v307 = vadd.f32 %v305, %v306
      %v308 = vrot.slane %v307, 1
      %v309 = vadd.f32 %v307, %v308
      %s310 = vtos %v309
      %v311 = vstv %s310
      %312 = vst [vmem:[#allocation10] sm:$0xff] %v311
    $region33: #{tpu_custom_call.1} parent=1 // pred_fallthru
      _
    // Predicated region
    $region34: #{tpu_custom_call.1} parent=1 // pred_check
      _
    $region35: #{tpu_custom_call.1} parent=1 // pred_check_branch
      %314 = sbr.rel (0) target = $region37
    $region36: #{tpu_custom_call.1} parent=1 // pred_region
      %s316 = ssub.s32 128, 128
      %317 = vsyncadd [#allocation7], %s316
      %s319 = sshll.u32 [#allocation10], 4
      %s320 = int_to_ptr.vmem [resolvable:$true] %s319
      %322 = dma.vmem_to_hbm [thread:$0]  %s320, 128, %s2, [#allocation7]
    $region37: #{tpu_custom_call.1} parent=1 // pred_fallthru
      _
    // Predicated region
    $region38: #{tpu_custom_call.1} parent=1 // pred_check
      _
    $region39: #{tpu_custom_call.1} parent=1 // pred_check_branch
      %324 = sbr.rel (0) target = $region41
    $region40: #{tpu_custom_call.1} parent=1 // pred_region
      %325 = dma.done [#allocation7], 128
    $region41: #{tpu_custom_call.1} parent=1 // pred_fallthru
      _
    %326 = vsyncpa [#allocation6], 1
    %327 = vsyncpa [#allocation9], 1
    %328 = vsyncpa [#allocation7], 1

</llo_original>
